<compile_context>
chip_gen: v7x
topology: tpu7x:2x2x1
jax: 0.10.0
libtpu: 0.0.40
codegen_flags: <defaults>
</compile_context>

<pallas_src>
import functools

import jax
import jax.numpy as jnp
from jax.experimental import pallas as pl
from jax.experimental.pallas import tpu as pltpu

_LANE = 128
_N_CHUNK = 512  # lane-chunk width for the per-layer epilogue


def _round_up(x, m):
    return ((x + m - 1) // m) * m


def _batch_tile(batch):
    """Batch tile: 16-row multiples for small batch (bf16 packing); 256-row
    tiles on v6e/v7x (2x256 MXU) and 128 on v5e/older for large batch."""
    if batch <= _LANE:
        return max(16, _round_up(batch, 16))
    try:
        kind = jax.devices()[0].device_kind.lower()
    except Exception:  # pragma: no cover - defensive
        kind = ""
    big = 256 if ("v6" in kind or "v7" in kind) else 128
    return big if batch >= big else _LANE


def _make_fused_mlp_kernel(layer_dims, out_dtype):
    """layer_dims = [(prev_p, d_out_p), ...], all lane-padded.

    Kernel refs = (x, w1, b1, ..., wn, bn, out, h_scratch).
    h_scratch: (2, tm, max_inter_p) bf16 ping-pong buffer for intermediates.
    """
    n_layers = len(layer_dims)

    def kernel(*refs):
        x_ref = refs[0]
        o_ref = refs[1 + 2 * n_layers]
        h_ref = refs[2 + 2 * n_layers]
        for i, (prev_p, d_out_p) in enumerate(layer_dims):
            w_ref = refs[1 + 2 * i]
            b_ref = refs[2 + 2 * i]
            last = i == n_layers - 1
            # Lane-chunked epilogue: each chunk's live f32 accumulator is only
            # (tm, <=512), so wide hidden layers don't blow the 64-vreg budget.
            for j in range(0, d_out_p, _N_CHUNK):
                cw = min(_N_CHUNK, d_out_p - j)
                src = (x_ref[...] if i == 0
                       else h_ref[(i - 1) % 2, :, :prev_p])
                acc = jnp.dot(src, w_ref[:, j:j + cw],
                              preferred_element_type=jnp.float32)
                act = jnp.maximum(acc + b_ref[:, j:j + cw], 0.0)
                if last:
                    o_ref[:, j:j + cw] = act.astype(out_dtype)
                else:
                    # Padded columns stay exactly 0 (zero weight cols + zero
                    # bias -> relu(0) = 0), so the next layer sees clean zeros.
                    h_ref[i % 2, :, j:j + cw] = act.astype(jnp.bfloat16)

    return kernel


def prepare_mlp_params(params):
    """One-time weight preparation: pad feature dims to multiples of 128 and
    cast to bf16 (biases stay f32). Done outside the hot path so forward
    passes read the prepared weights exactly once from HBM.

    params: list of (w, b) with w shaped (d_in, d_out) so that y = x @ w + b.
    Returns (padded_params, out_features).
    """
    prev_p = _round_up(params[0][0].shape[0], _LANE)
    padded = []
    d_out = params[0][0].shape[1]
    for (w, b) in params:
        d_in, d_out = w.shape
        d_out_p = _round_up(d_out, _LANE)
        wp = jnp.zeros((prev_p, d_out_p), jnp.bfloat16)
        wp = wp.at[:d_in, :d_out].set(w.astype(jnp.bfloat16))
        bp = jnp.zeros((1, d_out_p), jnp.float32).at[0, :d_out].set(b)
        padded.append((wp, bp))
        prev_p = d_out_p
    return padded, d_out


@functools.partial(jax.jit, static_argnames=("out_features", "out_dtype"))
def mlp_forward(x, padded_params, out_features, out_dtype=jnp.float32):
    """y = relu(...relu(relu(x@W1+b1)@W2+b2)...) in a single pallas_call."""
    B, Din = x.shape
    Din_p = padded_params[0][0].shape[0]
    out_p = padded_params[-1][0].shape[1]

    tm = _batch_tile(B)
    Bp = _round_up(B, tm)

    # Only the (small) activations get padded per call; weights were prepared
    # once in prepare_mlp_params.
    if Bp == B and Din_p == Din and x.dtype == jnp.bfloat16:
        xp = x
    else:
        xp = jnp.zeros((Bp, Din_p), jnp.bfloat16)
        xp = xp.at[:B, :Din].set(x.astype(jnp.bfloat16))

    args = [xp]
    in_specs = [pl.BlockSpec((tm, Din_p), lambda i: (i, 0))]
    layer_dims = []
    flops = 0
    weight_bytes = 0
    prev_p = Din_p
    for (wp, bp) in padded_params:
        d_out_p = wp.shape[1]
        layer_dims.append((prev_p, d_out_p))
        args += [wp, bp]
        # Constant index_map -> the same block is reused by every batch tile,
        # so a single VMEM buffer suffices (double-buffering = wasted VMEM).
        in_specs += [
            pl.BlockSpec((prev_p, d_out_p), lambda i: (0, 0),
                         pipeline_mode=pl.Buffered(buffer_count=1)),
            pl.BlockSpec((1, d_out_p), lambda i: (0, 0),
                         pipeline_mode=pl.Buffered(buffer_count=1)),
        ]
        flops += 2 * Bp * prev_p * d_out_p
        weight_bytes += (wp.size * wp.dtype.itemsize
                         + bp.size * bp.dtype.itemsize)
        prev_p = d_out_p

    max_inter_p = max([d for (_, d) in layer_dims[:-1]], default=_LANE)
    out_itemsize = jnp.dtype(out_dtype).itemsize

    # Explicit VMEM budget: single-buffered weights + double-buffered x / out
    # tiles + ping-pong activation scratch, 25% headroom, capped at 64 MiB so
    # the same budget is valid on v7x (v5e/v6e allow more).
    vmem_need = (weight_bytes
                 + 2 * tm * Din_p * 2
                 + 2 * tm * out_p * out_itemsize
                 + 2 * tm * max_inter_p * 2)
    vmem_limit = int(min(max(vmem_need * 1.25 + (2 << 20), 16 << 20), 64 << 20))

    bytes_accessed = (xp.size * xp.dtype.itemsize + weight_bytes
                      + Bp * out_p * out_itemsize)

    out_padded = pl.pallas_call(
        _make_fused_mlp_kernel(layer_dims, out_dtype),
        out_shape=jax.ShapeDtypeStruct((Bp, out_p), out_dtype),
        grid=(Bp // tm,),
        in_specs=in_specs,
        out_specs=pl.BlockSpec((tm, out_p), lambda i: (i, 0)),
        scratch_shapes=[pltpu.VMEM((2, tm, max_inter_p), jnp.bfloat16)],
        compiler_params=pltpu.CompilerParams(
            dimension_semantics=("parallel",),
            vmem_limit_bytes=vmem_limit,
        ),
        cost_estimate=pl.CostEstimate(
            flops=flops, transcendentals=0, bytes_accessed=bytes_accessed),
    )(*args)

    if Bp == B and out_p == out_features:
        return out_padded
    return out_padded[:B, :out_features]


def init_mlp_params(key, in_features, features):
    """Deterministic init mimicking nn.Linear (uniform +/- 1/sqrt(fan_in)).
    Weights stored pre-transposed as (in, out) so y = x @ W + b."""
    params = []
    prev = in_features
    for f in features:
        key, kw, kb = jax.random.split(key, 3)
        bound = 1.0 / jnp.sqrt(prev)
        w = jax.random.uniform(kw, (prev, f), jnp.float32, -bound, bound)
        b = jax.random.uniform(kb, (f,), jnp.float32, -bound, bound)
        params.append((w, b))
        prev = f
    return params


if __name__ == "__main__":
    key = jax.random.PRNGKey(0)
    in_features = 32
    features = [64, 48, 16]
    batch = 8

    kx, kp = jax.random.split(key)
    x = jax.random.normal(kx, (batch, in_features), jnp.float32)
    params = init_mlp_params(kp, in_features, features)

    # One-time weight preparation (padding + bf16 cast) outside the hot path.
    padded_params, out_features = prepare_mlp_params(params)

    y = mlp_forward(x, padded_params, out_features=out_features)
    jax.block_until_ready(y)

    # Reference mirroring the kernel numerics (bf16 MXU operands, f32 accum,
    # f32 bias + ReLU). The PyTorch module applies ReLU after every Linear,
    # including the last, so the kernel does too.
    h = x
    for (w, b) in params:
        a = jnp.dot(h.astype(jnp.bfloat16), w.astype(jnp.bfloat16),
                    preferred_element_type=jnp.float32) + b
        h = jnp.maximum(a, 0.0)
    y_ref = h

    assert y.shape == (batch, features[-1])
    assert jnp.allclose(y, y_ref, atol=1e-3, rtol=1e-3), float(
        jnp.max(jnp.abs(y - y_ref)))

    print("KERNEL_OK")
</pallas_src>

<mosaic_0001>
module attributes {stable_mosaic.version = 11 : i64} {
  func.func @kernel(%arg0: i32, %arg1: memref<16x128xbf16, #tpu.memory_space<vmem>>, %arg2: memref<128x128xbf16, #tpu.memory_space<vmem>>, %arg3: memref<1x128xf32, #tpu.memory_space<vmem>>, %arg4: memref<128x128xbf16, #tpu.memory_space<vmem>>, %arg5: memref<1x128xf32, #tpu.memory_space<vmem>>, %arg6: memref<128x128xbf16, #tpu.memory_space<vmem>>, %arg7: memref<1x128xf32, #tpu.memory_space<vmem>>, %arg8: memref<16x128xf32, #tpu.memory_space<vmem>>, %arg9: memref<2x16x128xbf16, #tpu.memory_space<vmem>>) attributes {dimension_semantics = [#tpu.dimension_semantics<parallel>], iteration_bounds = array<i64: 1>, scalar_prefetch = 0 : i64, scratch_operands = 1 : i64, tpu.core_type = #tpu.core_type<tc>, window_params = [{transform_indices = @transform_0, window_bounds = array<i64: 16, 128>}, {pipeline_mode = #tpu.pipeline_mode<synchronous>, transform_indices = @transform_1, window_bounds = array<i64: 128, 128>}, {pipeline_mode = #tpu.pipeline_mode<synchronous>, transform_indices = @transform_2, window_bounds = array<i64: 1, 128>}, {pipeline_mode = #tpu.pipeline_mode<synchronous>, transform_indices = @transform_3, window_bounds = array<i64: 128, 128>}, {pipeline_mode = #tpu.pipeline_mode<synchronous>, transform_indices = @transform_4, window_bounds = array<i64: 1, 128>}, {pipeline_mode = #tpu.pipeline_mode<synchronous>, transform_indices = @transform_5, window_bounds = array<i64: 128, 128>}, {pipeline_mode = #tpu.pipeline_mode<synchronous>, transform_indices = @transform_6, window_bounds = array<i64: 1, 128>}, {transform_indices = @transform_7, window_bounds = array<i64: 16, 128>}]} {
    %c0 = arith.constant 0 : index
    %c0_0 = arith.constant 0 : index
    %0 = vector.load %arg1[%c0, %c0_0] : memref<16x128xbf16, #tpu.memory_space<vmem>>, vector<16x128xbf16>
    %c0_1 = arith.constant 0 : index
    %c0_2 = arith.constant 0 : index
    %1 = vector.load %arg2[%c0_1, %c0_2] : memref<128x128xbf16, #tpu.memory_space<vmem>>, vector<128x128xbf16>
    %cst = arith.constant dense<0.000000e+00> : vector<16x128xf32>
    %2 = tpu.matmul %0, %1, %cst {dimension_numbers = #tpu.dot_dimension_numbers<[1], [0], [0], [1], [0, 0, 1, 1], [], []>} : vector<16x128xbf16>, vector<128x128xbf16>, vector<16x128xf32> -> vector<16x128xf32>
    %c0_3 = arith.constant 0 : index
    %c0_4 = arith.constant 0 : index
    %3 = vector.load %arg3[%c0_3, %c0_4] : memref<1x128xf32, #tpu.memory_space<vmem>>, vector<1x128xf32>
    %4 = vector.broadcast %3 : vector<1x128xf32> to vector<16x128xf32>
    %5 = arith.addf %2, %4 : vector<16x128xf32>
    %cst_5 = arith.constant 0.000000e+00 : f32
    %6 = vector.broadcast %cst_5 : f32 to vector<16x128xf32>
    %7 = arith.maximumf %5, %6 : vector<16x128xf32>
    %8 = arith.truncf %7 : vector<16x128xf32> to vector<16x128xbf16>
    %c0_6 = arith.constant 0 : index
    %c0_7 = arith.constant 0 : index
    %c0_8 = arith.constant 0 : index
    %9 = vector.load %arg9[%c0_6, %c0_7, %c0_8] : memref<2x16x128xbf16, #tpu.memory_space<vmem>>, vector<1x16x128xbf16>
    %10 = vector.shape_cast %9 : vector<1x16x128xbf16> to vector<16x128xbf16>
    %11 = vector.shape_cast %8 : vector<16x128xbf16> to vector<1x16x128xbf16>
    tpu.vector_store %arg9[%c0_6, %c0_7, %c0_8], %11 {strides = array<i32>} : memref<2x16x128xbf16, #tpu.memory_space<vmem>>, vector<1x16x128xbf16>,
    %c0_9 = arith.constant 0 : index
    %c0_10 = arith.constant 0 : index
    %c0_11 = arith.constant 0 : index
    %12 = vector.load %arg9[%c0_9, %c0_10, %c0_11] : memref<2x16x128xbf16, #tpu.memory_space<vmem>>, vector<1x16x128xbf16>
    %13 = vector.shape_cast %12 : vector<1x16x128xbf16> to vector<16x128xbf16>
    %c0_12 = arith.constant 0 : index
    %c0_13 = arith.constant 0 : index
    %14 = vector.load %arg4[%c0_12, %c0_13] : memref<128x128xbf16, #tpu.memory_space<vmem>>, vector<128x128xbf16>
    %cst_14 = arith.constant dense<0.000000e+00> : vector<16x128xf32>
    %15 = tpu.matmul %13, %14, %cst_14 {dimension_numbers = #tpu.dot_dimension_numbers<[1], [0], [0], [1], [0, 0, 1, 1], [], []>} : vector<16x128xbf16>, vector<128x128xbf16>, vector<16x128xf32> -> vector<16x128xf32>
    %c0_15 = arith.constant 0 : index
    %c0_16 = arith.constant 0 : index
    %16 = vector.load %arg5[%c0_15, %c0_16] : memref<1x128xf32, #tpu.memory_space<vmem>>, vector<1x128xf32>
    %17 = vector.broadcast %16 : vector<1x128xf32> to vector<16x128xf32>
    %18 = arith.addf %15, %17 : vector<16x128xf32>
    %cst_17 = arith.constant 0.000000e+00 : f32
    %19 = vector.broadcast %cst_17 : f32 to vector<16x128xf32>
    %20 = arith.maximumf %18, %19 : vector<16x128xf32>
    %21 = arith.truncf %20 : vector<16x128xf32> to vector<16x128xbf16>
    %c1 = arith.constant 1 : index
    %c0_18 = arith.constant 0 : index
    %c0_19 = arith.constant 0 : index
    %22 = vector.load %arg9[%c1, %c0_18, %c0_19] : memref<2x16x128xbf16, #tpu.memory_space<vmem>>, vector<1x16x128xbf16>
    %23 = vector.shape_cast %22 : vector<1x16x128xbf16> to vector<16x128xbf16>
    %24 = vector.shape_cast %21 : vector<16x128xbf16> to vector<1x16x128xbf16>
    tpu.vector_store %arg9[%c1, %c0_18, %c0_19], %24 {strides = array<i32>} : memref<2x16x128xbf16, #tpu.memory_space<vmem>>, vector<1x16x128xbf16>,
    %c1_20 = arith.constant 1 : index
    %c0_21 = arith.constant 0 : index
    %c0_22 = arith.constant 0 : index
    %25 = vector.load %arg9[%c1_20, %c0_21, %c0_22] : memref<2x16x128xbf16, #tpu.memory_space<vmem>>, vector<1x16x128xbf16>
    %26 = vector.shape_cast %25 : vector<1x16x128xbf16> to vector<16x128xbf16>
    %c0_23 = arith.constant 0 : index
    %c0_24 = arith.constant 0 : index
    %27 = vector.load %arg6[%c0_23, %c0_24] : memref<128x128xbf16, #tpu.memory_space<vmem>>, vector<128x128xbf16>
    %cst_25 = arith.constant dense<0.000000e+00> : vector<16x128xf32>
    %28 = tpu.matmul %26, %27, %cst_25 {dimension_numbers = #tpu.dot_dimension_numbers<[1], [0], [0], [1], [0, 0, 1, 1], [], []>} : vector<16x128xbf16>, vector<128x128xbf16>, vector<16x128xf32> -> vector<16x128xf32>
    %c0_26 = arith.constant 0 : index
    %c0_27 = arith.constant 0 : index
    %29 = vector.load %arg7[%c0_26, %c0_27] : memref<1x128xf32, #tpu.memory_space<vmem>>, vector<1x128xf32>
    %30 = vector.broadcast %29 : vector<1x128xf32> to vector<16x128xf32>
    %31 = arith.addf %28, %30 : vector<16x128xf32>
    %cst_28 = arith.constant 0.000000e+00 : f32
    %32 = vector.broadcast %cst_28 : f32 to vector<16x128xf32>
    %33 = arith.maximumf %31, %32 : vector<16x128xf32>
    %c0_29 = arith.constant 0 : index
    %c0_30 = arith.constant 0 : index
    %34 = vector.load %arg8[%c0_29, %c0_30] : memref<16x128xf32, #tpu.memory_space<vmem>>, vector<16x128xf32>
    tpu.vector_store %arg8[%c0_29, %c0_30], %33 {strides = array<i32>} : memref<16x128xf32, #tpu.memory_space<vmem>>, vector<16x128xf32>,
    return
  }
  func.func @transform_0(%arg0: i32) -> (i32, i32) {
    %c0_i32 = arith.constant 0 : i32
    %c0_i32_0 = arith.constant 0 : i32
    return %arg0, %c0_i32 : i32, i32
  }
  func.func @transform_1(%arg0: i32) -> (i32, i32) {
    %c0_i32 = arith.constant 0 : i32
    %c0_i32_0 = arith.constant 0 : i32
    %c0_i32_1 = arith.constant 0 : i32
    return %c0_i32, %c0_i32_0 : i32, i32
  }
  func.func @transform_2(%arg0: i32) -> (i32, i32) {
    %c0_i32 = arith.constant 0 : i32
    %c0_i32_0 = arith.constant 0 : i32
    %c0_i32_1 = arith.constant 0 : i32
    return %c0_i32, %c0_i32_0 : i32, i32
  }
  func.func @transform_3(%arg0: i32) -> (i32, i32) {
    %c0_i32 = arith.constant 0 : i32
    %c0_i32_0 = arith.constant 0 : i32
    %c0_i32_1 = arith.constant 0 : i32
    return %c0_i32, %c0_i32_0 : i32, i32
  }
  func.func @transform_4(%arg0: i32) -> (i32, i32) {
    %c0_i32 = arith.constant 0 : i32
    %c0_i32_0 = arith.constant 0 : i32
    %c0_i32_1 = arith.constant 0 : i32
    return %c0_i32, %c0_i32_0 : i32, i32
  }
  func.func @transform_5(%arg0: i32) -> (i32, i32) {
    %c0_i32 = arith.constant 0 : i32
    %c0_i32_0 = arith.constant 0 : i32
    %c0_i32_1 = arith.constant 0 : i32
    return %c0_i32, %c0_i32_0 : i32, i32
  }
  func.func @transform_6(%arg0: i32) -> (i32, i32) {
    %c0_i32 = arith.constant 0 : i32
    %c0_i32_0 = arith.constant 0 : i32
    %c0_i32_1 = arith.constant 0 : i32
    return %c0_i32, %c0_i32_0 : i32, i32
  }
  func.func @transform_7(%arg0: i32) -> (i32, i32) {
    %c0_i32 = arith.constant 0 : i32
    %c0_i32_0 = arith.constant 0 : i32
    return %arg0, %c0_i32 : i32, i32
  }
}

</mosaic_0001>

<llo_original>
// kernel: mlp_forward.1
$region0: #{mlp_forward.1}
  #allocation0 [shape = 'u32[]', space=smem, size = 0x4, offset = 0x4, fixed_abs, tag = 'smem constant byte address 0x4 - core index']
  #allocation1 [shape = 'u32[144,128]{1,0:T(1,128)}', space=vmem, size = 0x12000, scoped, tag = 'internal scratch']
  #allocation2 [shape = 'bf16[2,16,128]{2,1,0:T(16,128)(2,1)}', space=vmem, size = 0x2000, scoped, tag = 'scratch operand']
  %s0 = inlined_call_operand.vmem [shape: bf16[16,128], index: 0, kind: input, shape index: {}]
  %s1 = inlined_call_operand.hbm [shape: bf16[128,128], index: 1, kind: input, shape index: {}]
  %s2 = inlined_call_operand.vmem [shape: f32[1,128], index: 2, kind: input, shape index: {}]
  %s3 = inlined_call_operand.hbm [shape: bf16[128,128], index: 3, kind: input, shape index: {}]
  %s4 = inlined_call_operand.vmem [shape: f32[1,128], index: 4, kind: input, shape index: {}]
  %s5 = inlined_call_operand.hbm [shape: bf16[128,128], index: 5, kind: input, shape index: {}]
  %s6 = inlined_call_operand.vmem [shape: f32[1,128], index: 6, kind: input, shape index: {}]
  %s7 = inlined_call_operand.vmem [shape: f32[16,128], index: 7, kind: output, shape index: {}]
  %s8 = sld [smem:[#allocation0]]
  $region50: #{mlp_forward.1} parent=0
    _
  %s10 = ssub.s32 1, %s8
  %s11 = scalar_select 0, %s10, %s8
  $region1: #{mlp_forward.1} parent=0
    #allocation3 [shape = 'u8[32768]{0}', space=vmem, size = 0x8000, scoped, tag = 'input window, operand 1, single buffered']
    #allocation4 [shape = 's32[1]{0}', space=sflag, size = 0x4, scoped, tag = 'scoped memory for mlp_forward.1']
    #allocation5 [shape = 'u8[32768]{0}', space=vmem, size = 0x8000, scoped, tag = 'input window, operand 3, single buffered']
    #allocation6 [shape = 's32[1]{0}', space=sflag, size = 0x4, scoped, tag = 'scoped memory for mlp_forward.1']
    #allocation7 [shape = 'u8[32768]{0}', space=vmem, size = 0x8000, scoped, tag = 'input window, operand 5, single buffered']
    %12 = vsyncpa [#allocation4], 0
    %13 = vsyncpa [#allocation6], 0
    // Predicated region
    $region2: #{mlp_forward.1} parent=1 // pred_check
      _
    $region3: #{mlp_forward.1} parent=1 // pred_check_branch
      %15 = sbr.rel (0) target = $region5
    $region4: #{mlp_forward.1} parent=1 // pred_region
      _
    $region5: #{mlp_forward.1} parent=1 // pred_fallthru
      _
    // Predicated region
    $region6: #{mlp_forward.1} parent=1 // pred_check
      _
    $region7: #{mlp_forward.1} parent=1 // pred_check_branch
      %17 = sbr.rel (0) target = $region9
    $region8: #{mlp_forward.1} parent=1 // pred_region
      %s19 = ssub.s32 1024, 1024
      %20 = vsyncadd [#allocation4], %s19
      %s21 = sshll.u32 [#allocation3], 4
      %s22 = int_to_ptr.vmem [resolvable:$true] %s21
      %27 = dma.hbm_to_vmem [thread:$0]  %s1, 1024, %s22, [#allocation4], 64, 64, 4
    $region9: #{mlp_forward.1} parent=1 // pred_fallthru
      _
    // Predicated region
    $region10: #{mlp_forward.1} parent=1 // pred_check
      _
    $region11: #{mlp_forward.1} parent=1 // pred_check_branch
      %29 = sbr.rel (0) target = $region13
    $region12: #{mlp_forward.1} parent=1 // pred_region
      _
    $region13: #{mlp_forward.1} parent=1 // pred_fallthru
      _
    // Predicated region
    $region14: #{mlp_forward.1} parent=1 // pred_check
      _
    $region15: #{mlp_forward.1} parent=1 // pred_check_branch
      %31 = sbr.rel (0) target = $region17
    $region16: #{mlp_forward.1} parent=1 // pred_region
      %s33 = ssub.s32 1024, 1024
      %34 = vsyncadd [#allocation6], %s33
      %s35 = sshll.u32 [#allocation5], 4
      %s36 = int_to_ptr.vmem [resolvable:$true] %s35
      %41 = dma.hbm_to_vmem [thread:$0]  %s3, 1024, %s36, [#allocation6], 64, 64, 4
    $region17: #{mlp_forward.1} parent=1 // pred_fallthru
      _
    // Predicated region
    $region18: #{mlp_forward.1} parent=1 // pred_check
      _
    $region19: #{mlp_forward.1} parent=1 // pred_check_branch
      %43 = sbr.rel (0) target = $region21
    $region20: #{mlp_forward.1} parent=1 // pred_region
      _
    $region21: #{mlp_forward.1} parent=1 // pred_fallthru
      _
    // Predicated region
    $region22: #{mlp_forward.1} parent=1 // pred_check
      _
    $region23: #{mlp_forward.1} parent=1 // pred_check_branch
      %45 = sbr.rel (0) target = $region25
    $region24: #{mlp_forward.1} parent=1 // pred_region
      %s47 = ssub.s32 1024, 1024
      %48 = vsyncadd [#allocation6], %s47
      %s49 = sshll.u32 [#allocation7], 4
      %s50 = int_to_ptr.vmem [resolvable:$true] %s49
      %55 = dma.hbm_to_vmem [thread:$0]  %s5, 1024, %s50, [#allocation6], 64, 64, 4
    $region25: #{mlp_forward.1} parent=1 // pred_fallthru
      _
    // Predicated region
    $region26: #{mlp_forward.1} parent=1 // pred_check
      _
    $region27: #{mlp_forward.1} parent=1 // pred_check_branch
      %57 = sbr.rel (0) target = $region29
    $region28: #{mlp_forward.1} parent=1 // pred_region
      _
    $region29: #{mlp_forward.1} parent=1 // pred_fallthru
      _
    // Predicated region
    $region30: #{mlp_forward.1} parent=1 // pred_check
      _
    $region31: #{mlp_forward.1} parent=1 // pred_check_branch
      %59 = sbr.rel (0) target = $region33
    $region32: #{mlp_forward.1} parent=1 // pred_region
      %60 = dma.done [#allocation4], 1024
    $region33: #{mlp_forward.1} parent=1 // pred_fallthru
      _
    // Predicated region
    $region34: #{mlp_forward.1} parent=1 // pred_check
      _
    $region35: #{mlp_forward.1} parent=1 // pred_check_branch
      %62 = sbr.rel (0) target = $region37
    $region36: #{mlp_forward.1} parent=1 // pred_region
      %63 = dma.done [#allocation6], 1024
    $region37: #{mlp_forward.1} parent=1 // pred_fallthru
      _
    // Predicated region
    $region38: #{mlp_forward.1} parent=1 // pred_check
      _
    $region39: #{mlp_forward.1} parent=1 // pred_check_branch
      %65 = sbr.rel (0) target = $region41
    $region40: #{mlp_forward.1} parent=1 // pred_region
      %66 = dma.done [#allocation6], 1024
    $region41: #{mlp_forward.1} parent=1 // pred_fallthru
      _
    %v68 = vld [vmem:[%s0] sm:$0xf]
    %v69 = vld [vmem:[%s0 + $0x4] sm:$0xf]
    %v70 = vld [vmem:[#allocation3] sm:$0xf]
    %v71 = vld [vmem:[#allocation3 + $0x4] sm:$0xf]
    %v72 = vld [vmem:[#allocation3 + $0x8] sm:$0xf]
    %v73 = vld [vmem:[#allocation3 + $0xc] sm:$0xf]
    %v74 = vld [vmem:[#allocation3 + $0x10] sm:$0xf]
    %v75 = vld [vmem:[#allocation3 + $0x14] sm:$0xf]
    %v76 = vld [vmem:[#allocation3 + $0x18] sm:$0xf]
    %v77 = vld [vmem:[#allocation3 + $0x1c] sm:$0xf]
    %v78 = vld [vmem:[#allocation3 + $0x20] sm:$0xf]
    %v79 = vld [vmem:[#allocation3 + $0x24] sm:$0xf]
    %v80 = vld [vmem:[#allocation3 + $0x28] sm:$0xf]
    %v81 = vld [vmem:[#allocation3 + $0x2c] sm:$0xf]
    %v82 = vld [vmem:[#allocation3 + $0x30] sm:$0xf]
    %v83 = vld [vmem:[#allocation3 + $0x34] sm:$0xf]
    %v84 = vld [vmem:[#allocation3 + $0x38] sm:$0xf]
    %v85 = vld [vmem:[#allocation3 + $0x3c] sm:$0xf]
    %v86 = vld [vmem:[%s2] sm:$0x1]
    %v88 = vlaneseq
    %v89 = vshrl.u32 %v88, 7
    %v90 = vsub.s32 0, %v89
    %v91 = vrot.slane %v86, %v90
    %v95 = vunpack.c.l.b16 %v68
    %v96 = vunpack.c.l.b16 %v69
    %v97 = vpack.c.b16 %v96, %v95
    %v115 = vunpack.c.l.b16 %v70
    %v116 = vunpack.c.l.b16 %v71
    %v117 = vunpack.c.l.b16 %v72
    %v118 = vunpack.c.l.b16 %v73
    %v119 = vunpack.c.l.b16 %v74
    %v120 = vunpack.c.l.b16 %v75
    %v121 = vunpack.c.l.b16 %v76
    %v122 = vunpack.c.l.b16 %v77
    %v123 = vunpack.c.l.b16 %v78
    %v124 = vunpack.c.l.b16 %v79
    %v125 = vunpack.c.l.b16 %v80
    %v126 = vunpack.c.l.b16 %v81
    %v127 = vunpack.c.l.b16 %v82
    %v128 = vunpack.c.l.b16 %v83
    %v129 = vunpack.c.l.b16 %v84
    %v130 = vunpack.c.l.b16 %v85
    %v131 = vpack.c.b16 %v116, %v115
    %v132 = vpack.c.b16 %v118, %v117
    %v133 = vpack.c.b16 %v120, %v119
    %v134 = vpack.c.b16 %v122, %v121
    %v135 = vpack.c.b16 %v124, %v123
    %v136 = vpack.c.b16 %v126, %v125
    %v137 = vpack.c.b16 %v128, %v127
    %v138 = vpack.c.b16 %v130, %v129
    %147 = vmatprep.subr.bf16.mxu0 0
    %148 = vmatpush1.bf16.msra.mxu0 %v131
    %149 = vmatprep.subr.bf16.mxu0 0
    %150 = vmatpush1.bf16.msra.mxu0 %v132
    %151 = vmatprep.subr.bf16.mxu0 0
    %152 = vmatpush1.bf16.msra.mxu0 %v133
    %153 = vmatprep.subr.bf16.mxu0 0
    %154 = vmatpush1.bf16.msra.mxu0 %v134
    %155 = vmatprep.subr.bf16.mxu0 0
    %156 = vmatpush1.bf16.msra.mxu0 %v135
    %157 = vmatprep.subr.bf16.mxu0 0
    %158 = vmatpush1.bf16.msra.mxu0 %v136
    %159 = vmatprep.subr.bf16.mxu0 0
    %160 = vmatpush1.bf16.msra.mxu0 %v137
    %161 = vmatprep.subr.bf16.mxu0 0
    %162 = vmatpush1.bf16.msra.mxu0 %v138
    %163 = vmatprep.subr.bf16.mxu0 0
    %164 = vmatpush1.bf16.msra.mxu0 0
    %165 = vmatprep.subr.bf16.mxu0 0
    %166 = vmatpush1.bf16.msra.mxu0 0
    %167 = vmatprep.subr.bf16.mxu0 0
    %168 = vmatpush1.bf16.msra.mxu0 0
    %169 = vmatprep.subr.bf16.mxu0 0
    %170 = vmatpush1.bf16.msra.mxu0 0
    %171 = vmatprep.subr.bf16.mxu0 0
    %172 = vmatpush1.bf16.msra.mxu0 0
    %173 = vmatprep.subr.bf16.mxu0 0
    %174 = vmatpush1.bf16.msra.mxu0 0
    %175 = vmatprep.subr.bf16.mxu0 0
    %176 = vmatpush1.bf16.msra.mxu0 0
    %177 = vmatprep.subr.bf16.mxu0 0
    %178 = vmatpush1.bf16.msra.mxu0 0
    %179 = vmatprep.mubr.bf16.mxu0 0
    %180 = vmatmul.mubr.bf16.gmra.mrb[0].mxu0 %v97
    %v181 = vpop.f32.mrb[0].mxu0
    %v182 = vadd.f32 %v91, %v181
    %v183 = vpop.f32.mrb[0].mxu0
    %v184 = vpop.f32.mrb[0].mxu0
    %v185 = vadd.f32 %v91, %v184
    %v186 = vpop.f32.mrb[0].mxu0
    %187 = vdwg.mxu0
    %v188 = vmax.f32 %v182, 0.0
    %v189 = vmax.f32 %v185, 0.0
    %v190 = vpack.c.bf16 %v189, %v188
    %191 = vst [vmem:[#allocation2] sm:$0xff] %v190
    %v192 = vld [vmem:[#allocation2] sm:$0xff]
    %v193 = vld [vmem:[#allocation5] sm:$0xf]
    %v194 = vld [vmem:[#allocation5 + $0x4] sm:$0xf]
    %v195 = vld [vmem:[#allocation5 + $0x8] sm:$0xf]
    %v196 = vld [vmem:[#allocation5 + $0xc] sm:$0xf]
    %v197 = vld [vmem:[#allocation5 + $0x10] sm:$0xf]
    %v198 = vld [vmem:[#allocation5 + $0x14] sm:$0xf]
    %v199 = vld [vmem:[#allocation5 + $0x18] sm:$0xf]
    %v200 = vld [vmem:[#allocation5 + $0x1c] sm:$0xf]
    %v201 = vld [vmem:[#allocation5 + $0x20] sm:$0xf]
    %v202 = vld [vmem:[#allocation5 + $0x24] sm:$0xf]
    %v203 = vld [vmem:[#allocation5 + $0x28] sm:$0xf]
    %v204 = vld [vmem:[#allocation5 + $0x2c] sm:$0xf]
    %v205 = vld [vmem:[#allocation5 + $0x30] sm:$0xf]
    %v206 = vld [vmem:[#allocation5 + $0x34] sm:$0xf]
    %v207 = vld [vmem:[#allocation5 + $0x38] sm:$0xf]
    %v208 = vld [vmem:[#allocation5 + $0x3c] sm:$0xf]
    %v209 = vld [vmem:[%s4] sm:$0x1]
    %v211 = vlaneseq
    %v212 = vshrl.u32 %v211, 7
    %v213 = vsub.s32 0, %v212
    %v214 = vrot.slane %v209, %v213
    %v232 = vunpack.c.l.b16 %v193
    %v233 = vunpack.c.l.b16 %v194
    %v234 = vunpack.c.l.b16 %v195
    %v235 = vunpack.c.l.b16 %v196
    %v236 = vunpack.c.l.b16 %v197
    %v237 = vunpack.c.l.b16 %v198
    %v238 = vunpack.c.l.b16 %v199
    %v239 = vunpack.c.l.b16 %v200
    %v240 = vunpack.c.l.b16 %v201
    %v241 = vunpack.c.l.b16 %v202
    %v242 = vunpack.c.l.b16 %v203
    %v243 = vunpack.c.l.b16 %v204
    %v244 = vunpack.c.l.b16 %v205
    %v245 = vunpack.c.l.b16 %v206
    %v246 = vunpack.c.l.b16 %v207
    %v247 = vunpack.c.l.b16 %v208
    %v248 = vpack.c.b16 %v233, %v232
    %v249 = vpack.c.b16 %v235, %v234
    %v250 = vpack.c.b16 %v237, %v236
    %v251 = vpack.c.b16 %v239, %v238
    %v252 = vpack.c.b16 %v241, %v240
    %v253 = vpack.c.b16 %v243, %v242
    %v254 = vpack.c.b16 %v245, %v244
    %v255 = vpack.c.b16 %v247, %v246
    %264 = vmatprep.subr.bf16.mxu0 0
    %265 = vmatpush1.bf16.msra.mxu0 %v248
    %266 = vmatprep.subr.bf16.mxu0 0
    %267 = vmatpush1.bf16.msra.mxu0 %v249
    %268 = vmatprep.subr.bf16.mxu0 0
    %269 = vmatpush1.bf16.msra.mxu0 %v250
    %270 = vmatprep.subr.bf16.mxu0 0
    %271 = vmatpush1.bf16.msra.mxu0 %v251
    %272 = vmatprep.subr.bf16.mxu0 0
    %273 = vmatpush1.bf16.msra.mxu0 %v252
    %274 = vmatprep.subr.bf16.mxu0 0
    %275 = vmatpush1.bf16.msra.mxu0 %v253
    %276 = vmatprep.subr.bf16.mxu0 0
    %277 = vmatpush1.bf16.msra.mxu0 %v254
    %278 = vmatprep.subr.bf16.mxu0 0
    %279 = vmatpush1.bf16.msra.mxu0 %v255
    %280 = vmatprep.subr.bf16.mxu0 0
    %281 = vmatpush1.bf16.msra.mxu0 0
    %282 = vmatprep.subr.bf16.mxu0 0
    %283 = vmatpush1.bf16.msra.mxu0 0
    %284 = vmatprep.subr.bf16.mxu0 0
    %285 = vmatpush1.bf16.msra.mxu0 0
    %286 = vmatprep.subr.bf16.mxu0 0
    %287 = vmatpush1.bf16.msra.mxu0 0
    %288 = vmatprep.subr.bf16.mxu0 0
    %289 = vmatpush1.bf16.msra.mxu0 0
    %290 = vmatprep.subr.bf16.mxu0 0
    %291 = vmatpush1.bf16.msra.mxu0 0
    %292 = vmatprep.subr.bf16.mxu0 0
    %293 = vmatpush1.bf16.msra.mxu0 0
    %294 = vmatprep.subr.bf16.mxu0 0
    %295 = vmatpush1.bf16.msra.mxu0 0
    %296 = vmatprep.mubr.bf16.mxu0 0
    %297 = vmatmul.mubr.bf16.gmra.mrb[0].mxu0 %v192
    %v298 = vpop.f32.mrb[0].mxu0
    %v299 = vadd.f32 %v214, %v298
    %v300 = vpop.f32.mrb[0].mxu0
    %v301 = vpop.f32.mrb[0].mxu0
    %v302 = vadd.f32 %v214, %v301
    %v303 = vpop.f32.mrb[0].mxu0
    %304 = vdwg.mxu0
    %v305 = vmax.f32 %v299, 0.0
    %v306 = vmax.f32 %v302, 0.0
    %v307 = vpack.c.bf16 %v306, %v305
    %s308 = scalar_lea.vmem [#allocation2], 8
    %309 = vst [vmem:[%s308] sm:$0xff] %v307
    %v310 = vld [vmem:[%s308] sm:$0xff]
    %v311 = vld [vmem:[#allocation7] sm:$0xf]
    %v312 = vld [vmem:[#allocation7 + $0x4] sm:$0xf]
    %v313 = vld [vmem:[#allocation7 + $0x8] sm:$0xf]
    %v314 = vld [vmem:[#allocation7 + $0xc] sm:$0xf]
    %v315 = vld [vmem:[#allocation7 + $0x10] sm:$0xf]
    %v316 = vld [vmem:[#allocation7 + $0x14] sm:$0xf]
    %v317 = vld [vmem:[#allocation7 + $0x18] sm:$0xf]
    %v318 = vld [vmem:[#allocation7 + $0x1c] sm:$0xf]
    %v319 = vld [vmem:[#allocation7 + $0x20] sm:$0xf]
    %v320 = vld [vmem:[#allocation7 + $0x24] sm:$0xf]
    %v321 = vld [vmem:[#allocation7 + $0x28] sm:$0xf]
    %v322 = vld [vmem:[#allocation7 + $0x2c] sm:$0xf]
    %v323 = vld [vmem:[#allocation7 + $0x30] sm:$0xf]
    %v324 = vld [vmem:[#allocation7 + $0x34] sm:$0xf]
    %v325 = vld [vmem:[#allocation7 + $0x38] sm:$0xf]
    %v326 = vld [vmem:[#allocation7 + $0x3c] sm:$0xf]
    %v327 = vld [vmem:[%s6] sm:$0x1]
    %v329 = vlaneseq
    %v330 = vshrl.u32 %v329, 7
    %v331 = vsub.s32 0, %v330
    %v332 = vrot.slane %v327, %v331
    %v350 = vunpack.c.l.b16 %v311
    %v351 = vunpack.c.l.b16 %v312
    %v352 = vunpack.c.l.b16 %v313
    %v353 = vunpack.c.l.b16 %v314
    %v354 = vunpack.c.l.b16 %v315
    %v355 = vunpack.c.l.b16 %v316
    %v356 = vunpack.c.l.b16 %v317
    %v357 = vunpack.c.l.b16 %v318
    %v358 = vunpack.c.l.b16 %v319
    %v359 = vunpack.c.l.b16 %v320
    %v360 = vunpack.c.l.b16 %v321
    %v361 = vunpack.c.l.b16 %v322
    %v362 = vunpack.c.l.b16 %v323
    %v363 = vunpack.c.l.b16 %v324
    %v364 = vunpack.c.l.b16 %v325
    %v365 = vunpack.c.l.b16 %v326
    %v366 = vpack.c.b16 %v351, %v350
    %v367 = vpack.c.b16 %v353, %v352
    %v368 = vpack.c.b16 %v355, %v354
    %v369 = vpack.c.b16 %v357, %v356
    %v370 = vpack.c.b16 %v359, %v358
    %v371 = vpack.c.b16 %v361, %v360
    %v372 = vpack.c.b16 %v363, %v362
    %v373 = vpack.c.b16 %v365, %v364
    %382 = vmatprep.subr.bf16.mxu0 0
    %383 = vmatpush1.bf16.msra.mxu0 %v366
    %384 = vmatprep.subr.bf16.mxu0 0
    %385 = vmatpush1.bf16.msra.mxu0 %v367
    %386 = vmatprep.subr.bf16.mxu0 0
    %387 = vmatpush1.bf16.msra.mxu0 %v368
    %388 = vmatprep.subr.bf16.mxu0 0
    %389 = vmatpush1.bf16.msra.mxu0 %v369
    %390 = vmatprep.subr.bf16.mxu0 0
    %391 = vmatpush1.bf16.msra.mxu0 %v370
    %392 = vmatprep.subr.bf16.mxu0 0
    %393 = vmatpush1.bf16.msra.mxu0 %v371
    %394 = vmatprep.subr.bf16.mxu0 0
    %395 = vmatpush1.bf16.msra.mxu0 %v372
    %396 = vmatprep.subr.bf16.mxu0 0
    %397 = vmatpush1.bf16.msra.mxu0 %v373
    %398 = vmatprep.subr.bf16.mxu0 0
    %399 = vmatpush1.bf16.msra.mxu0 0
    %400 = vmatprep.subr.bf16.mxu0 0
    %401 = vmatpush1.bf16.msra.mxu0 0
    %402 = vmatprep.subr.bf16.mxu0 0
    %403 = vmatpush1.bf16.msra.mxu0 0
    %404 = vmatprep.subr.bf16.mxu0 0
    %405 = vmatpush1.bf16.msra.mxu0 0
    %406 = vmatprep.subr.bf16.mxu0 0
    %407 = vmatpush1.bf16.msra.mxu0 0
    %408 = vmatprep.subr.bf16.mxu0 0
    %409 = vmatpush1.bf16.msra.mxu0 0
    %410 = vmatprep.subr.bf16.mxu0 0
    %411 = vmatpush1.bf16.msra.mxu0 0
    %412 = vmatprep.subr.bf16.mxu0 0
    %413 = vmatpush1.bf16.msra.mxu0 0
    %414 = vmatprep.mubr.bf16.mxu0 0
    %415 = vmatmul.mubr.bf16.gmra.mrb[0].mxu0 %v310
    %v416 = vpop.f32.mrb[0].mxu0
    %v417 = vadd.f32 %v332, %v416
    %v418 = vpop.f32.mrb[0].mxu0
    %v419 = vpop.f32.mrb[0].mxu0
    %v420 = vadd.f32 %v332, %v419
    %v421 = vpop.f32.mrb[0].mxu0
    %422 = vdwg.mxu0
    %v423 = vmax.f32 %v417, 0.0
    %v424 = vmax.f32 %v420, 0.0
    %425 = vst [vmem:[%s7] sm:$0xff] %v423
    %426 = vst [vmem:[%s7 + $0x8] sm:$0xff] %v424
    // Predicated region
    $region42: #{mlp_forward.1} parent=1 // pred_check
      _
    $region43: #{mlp_forward.1} parent=1 // pred_check_branch
      %428 = sbr.rel (0) target = $region45
    $region44: #{mlp_forward.1} parent=1 // pred_region
      _
    $region45: #{mlp_forward.1} parent=1 // pred_fallthru
      _
    // Predicated region
    $region46: #{mlp_forward.1} parent=1 // pred_check
      _
    $region47: #{mlp_forward.1} parent=1 // pred_check_branch
      %430 = sbr.rel (0) target = $region49
    $region48: #{mlp_forward.1} parent=1 // pred_region
      _
    $region49: #{mlp_forward.1} parent=1 // pred_fallthru
      _
    %431 = vsyncpa [#allocation4], 1
    %432 = vsyncpa [#allocation6], 1

</llo_original>
